<compile_context>
chip_gen: v6e
topology: v6e:2x2x1
jax: 0.10.0
libtpu: 0.0.40
codegen_flags: <defaults>
</compile_context>

<pallas_src>
import functools

import jax
import jax.numpy as jnp
from jax.experimental import pallas as pl
from jax.experimental.pallas import tpu as pltpu

_LANE = 128


def _round_up(n, m):
    return (n + m - 1) // m * m


def _long_skip_kernel(w_ref, x_ref, s_ref, o_ref):
    """out[c, :] = x[c, :] + sum_s w[s, c] * skip[s, :].

    w_ref : SMEM (Cs, Cin)  1x1-conv weight (scalar-prefetched).
    x_ref : VMEM (Cin, T)   decoder tile (channels on sublanes, pixels on lanes).
    s_ref : VMEM (Cs,  T)   encoder-skip tile.
    o_ref : VMEM (Cin, T)
    """
    cs, cin = w_ref.shape
    x = x_ref[...].astype(jnp.float32)
    s = s_ref[...].astype(jnp.float32)

    rows = []
    for c in range(cin):
        acc = x[c:c + 1, :]                              # (1, T)
        for si in range(cs):                             # unrolled VPU FMAs
            acc = acc + w_ref[si, c] * s[si:si + 1, :]
        rows.append(acc)
    o_ref[...] = jnp.concatenate(rows, axis=0).astype(o_ref.dtype)


@functools.partial(jax.jit, static_argnames=("max_tile_px",))
def long_skip_unet_sum(x, skip, w, *, max_tile_px=8192):
    """LongSkip('unet', merge_policy='sum') forward.

    x    : (B, Cin, H, W)  decoder feature (NCHW, like PyTorch)
    skip : (B, Cs,  H, W)  encoder skip feature (NCHW)
    w    : (Cs, Cin)       1x1-conv weight (torch Conv2d weight (Cin,Cs,1,1)
                           squeezed and transposed)
    returns (B, Cin, H, W)
    """
    b, cin, h, wdt = x.shape
    cs = skip.shape[1]
    hw = h * wdt

    x3 = x.reshape(b, cin, hw)          # free reshape, stays NCHW-contiguous
    s3 = skip.reshape(b, cs, hw)

    # Lane-aligned pixel tile: multiple of 128, capped at max_tile_px.
    tile = _round_up(min(max_tile_px, _round_up(hw, _LANE)), _LANE)
    hw_pad = _round_up(hw, tile)
    if hw_pad != hw:
        # TODO(synk): a masked tail block would avoid this small padded-traffic cost.
        pad = hw_pad - hw
        x3 = jnp.pad(x3, ((0, 0), (0, 0), (0, pad)))
        s3 = jnp.pad(s3, ((0, 0), (0, 0), (0, pad)))

    grid = (b, hw_pad // tile)

    out3 = pl.pallas_call(
        _long_skip_kernel,
        out_shape=jax.ShapeDtypeStruct((b, cin, hw_pad), x.dtype),
        grid_spec=pltpu.PrefetchScalarGridSpec(
            num_scalar_prefetch=1,                      # w -> SMEM
            grid=grid,
            in_specs=[
                pl.BlockSpec((pl.Squeezed(), cin, tile),
                             lambda bi, pi, w_s: (bi, 0, pi)),
                pl.BlockSpec((pl.Squeezed(), cs, tile),
                             lambda bi, pi, w_s: (bi, 0, pi)),
            ],
            out_specs=pl.BlockSpec((pl.Squeezed(), cin, tile),
                                   lambda bi, pi, w_s: (bi, 0, pi)),
        ),
        compiler_params=pltpu.CompilerParams(
            dimension_semantics=("parallel", "parallel"),
        ),
    )(w, x3, s3)

    if hw_pad != hw:
        out3 = out3[:, :, :hw]
    return out3.reshape(b, cin, h, wdt)


def reference_forward(x, skip, w):
    """Pure-JAX reference of the same forward pass (for validation)."""
    proj = jnp.einsum("bshw,sc->bchw", skip.astype(jnp.float32),
                      w.astype(jnp.float32))
    return (x.astype(jnp.float32) + proj).astype(x.dtype)


if __name__ == "__main__":
    key = jax.random.PRNGKey(0)
    k_x, k_s, k_w = jax.random.split(key, 3)

    B, Cin, Cs, H, W = 2, 4, 8, 16, 16

    x = jax.random.normal(k_x, (B, Cin, H, W), dtype=jnp.float32)
    skip = jax.random.normal(k_s, (B, Cs, H, W), dtype=jnp.float32)
    # ChannelPool: Conv2d(Cs, Cin, kernel=1, bias=False) weight, stored (Cs, Cin).
    w = jax.random.normal(k_w, (Cs, Cin), dtype=jnp.float32) * (1.0 / jnp.sqrt(Cs))

    out = long_skip_unet_sum(x, skip, w)
    out = jax.block_until_ready(out)

    ref = reference_forward(x, skip, w)
    assert out.shape == (B, Cin, H, W)
    assert jnp.allclose(out, ref, atol=1e-5, rtol=1e-5)

    print("KERNEL_OK")
</pallas_src>

<mosaic_0001>
module attributes {stable_mosaic.version = 11 : i64} {
  func.func @_long_skip_kernel(%arg0: i32, %arg1: i32, %arg2: memref<8x4xf32, #tpu.memory_space<smem>>, %arg3: memref<1x4x256xf32, #tpu.memory_space<vmem>>, %arg4: memref<1x8x256xf32, #tpu.memory_space<vmem>>, %arg5: memref<1x4x256xf32, #tpu.memory_space<vmem>>) attributes {dimension_semantics = [#tpu.dimension_semantics<parallel>, #tpu.dimension_semantics<parallel>], iteration_bounds = array<i64: 2, 1>, scalar_prefetch = 1 : i64, scratch_operands = 0 : i64, tpu.core_type = #tpu.core_type<tc>, window_params = [{transform_indices = @transform_0, window_bounds = array<i64: 1, 4, 256>}, {transform_indices = @transform_1, window_bounds = array<i64: 1, 8, 256>}, {transform_indices = @transform_2, window_bounds = array<i64: 1, 4, 256>}]} {
    %c0 = arith.constant 0 : index
    %c0_0 = arith.constant 0 : index
    %c0_1 = arith.constant 0 : index
    %0 = vector.load %arg3[%c0, %c0_0, %c0_1] : memref<1x4x256xf32, #tpu.memory_space<vmem>>, vector<1x4x256xf32>
    %1 = vector.shape_cast %0 : vector<1x4x256xf32> to vector<4x256xf32>
    %c0_2 = arith.constant 0 : index
    %c0_3 = arith.constant 0 : index
    %c0_4 = arith.constant 0 : index
    %2 = vector.load %arg4[%c0_2, %c0_3, %c0_4] : memref<1x8x256xf32, #tpu.memory_space<vmem>>, vector<1x8x256xf32>
    %3 = vector.shape_cast %2 : vector<1x8x256xf32> to vector<8x256xf32>
    %4 = vector.extract_strided_slice %1 {offsets = [0, 0], sizes = [1, 256], strides = [1, 1]} : vector<4x256xf32> to vector<1x256xf32>
    %c0_5 = arith.constant 0 : index
    %c0_6 = arith.constant 0 : index
    %5 = memref.load %arg2[%c0_5, %c0_6] : memref<8x4xf32, #tpu.memory_space<smem>>
    %6 = vector.extract_strided_slice %3 {offsets = [0, 0], sizes = [1, 256], strides = [1, 1]} : vector<8x256xf32> to vector<1x256xf32>
    %7 = vector.broadcast %5 : f32 to vector<1x256xf32>
    %8 = arith.mulf %7, %6 : vector<1x256xf32>
    %9 = arith.addf %4, %8 : vector<1x256xf32>
    %c1 = arith.constant 1 : index
    %c0_7 = arith.constant 0 : index
    %10 = memref.load %arg2[%c1, %c0_7] : memref<8x4xf32, #tpu.memory_space<smem>>
    %11 = vector.extract_strided_slice %3 {offsets = [1, 0], sizes = [1, 256], strides = [1, 1]} : vector<8x256xf32> to vector<1x256xf32>
    %12 = vector.broadcast %10 : f32 to vector<1x256xf32>
    %13 = arith.mulf %12, %11 : vector<1x256xf32>
    %14 = arith.addf %9, %13 : vector<1x256xf32>
    %c2 = arith.constant 2 : index
    %c0_8 = arith.constant 0 : index
    %15 = memref.load %arg2[%c2, %c0_8] : memref<8x4xf32, #tpu.memory_space<smem>>
    %16 = vector.extract_strided_slice %3 {offsets = [2, 0], sizes = [1, 256], strides = [1, 1]} : vector<8x256xf32> to vector<1x256xf32>
    %17 = vector.broadcast %15 : f32 to vector<1x256xf32>
    %18 = arith.mulf %17, %16 : vector<1x256xf32>
    %19 = arith.addf %14, %18 : vector<1x256xf32>
    %c3 = arith.constant 3 : index
    %c0_9 = arith.constant 0 : index
    %20 = memref.load %arg2[%c3, %c0_9] : memref<8x4xf32, #tpu.memory_space<smem>>
    %21 = vector.extract_strided_slice %3 {offsets = [3, 0], sizes = [1, 256], strides = [1, 1]} : vector<8x256xf32> to vector<1x256xf32>
    %22 = vector.broadcast %20 : f32 to vector<1x256xf32>
    %23 = arith.mulf %22, %21 : vector<1x256xf32>
    %24 = arith.addf %19, %23 : vector<1x256xf32>
    %c4 = arith.constant 4 : index
    %c0_10 = arith.constant 0 : index
    %25 = memref.load %arg2[%c4, %c0_10] : memref<8x4xf32, #tpu.memory_space<smem>>
    %26 = vector.extract_strided_slice %3 {offsets = [4, 0], sizes = [1, 256], strides = [1, 1]} : vector<8x256xf32> to vector<1x256xf32>
    %27 = vector.broadcast %25 : f32 to vector<1x256xf32>
    %28 = arith.mulf %27, %26 : vector<1x256xf32>
    %29 = arith.addf %24, %28 : vector<1x256xf32>
    %c5 = arith.constant 5 : index
    %c0_11 = arith.constant 0 : index
    %30 = memref.load %arg2[%c5, %c0_11] : memref<8x4xf32, #tpu.memory_space<smem>>
    %31 = vector.extract_strided_slice %3 {offsets = [5, 0], sizes = [1, 256], strides = [1, 1]} : vector<8x256xf32> to vector<1x256xf32>
    %32 = vector.broadcast %30 : f32 to vector<1x256xf32>
    %33 = arith.mulf %32, %31 : vector<1x256xf32>
    %34 = arith.addf %29, %33 : vector<1x256xf32>
    %c6 = arith.constant 6 : index
    %c0_12 = arith.constant 0 : index
    %35 = memref.load %arg2[%c6, %c0_12] : memref<8x4xf32, #tpu.memory_space<smem>>
    %36 = vector.extract_strided_slice %3 {offsets = [6, 0], sizes = [1, 256], strides = [1, 1]} : vector<8x256xf32> to vector<1x256xf32>
    %37 = vector.broadcast %35 : f32 to vector<1x256xf32>
    %38 = arith.mulf %37, %36 : vector<1x256xf32>
    %39 = arith.addf %34, %38 : vector<1x256xf32>
    %c7 = arith.constant 7 : index
    %c0_13 = arith.constant 0 : index
    %40 = memref.load %arg2[%c7, %c0_13] : memref<8x4xf32, #tpu.memory_space<smem>>
    %41 = vector.extract_strided_slice %3 {offsets = [7, 0], sizes = [1, 256], strides = [1, 1]} : vector<8x256xf32> to vector<1x256xf32>
    %42 = vector.broadcast %40 : f32 to vector<1x256xf32>
    %43 = arith.mulf %42, %41 : vector<1x256xf32>
    %44 = arith.addf %39, %43 : vector<1x256xf32>
    %45 = vector.extract_strided_slice %1 {offsets = [1, 0], sizes = [1, 256], strides = [1, 1]} : vector<4x256xf32> to vector<1x256xf32>
    %c0_14 = arith.constant 0 : index
    %c1_15 = arith.constant 1 : index
    %46 = memref.load %arg2[%c0_14, %c1_15] : memref<8x4xf32, #tpu.memory_space<smem>>
    %47 = vector.extract_strided_slice %3 {offsets = [0, 0], sizes = [1, 256], strides = [1, 1]} : vector<8x256xf32> to vector<1x256xf32>
    %48 = vector.broadcast %46 : f32 to vector<1x256xf32>
    %49 = arith.mulf %48, %47 : vector<1x256xf32>
    %50 = arith.addf %45, %49 : vector<1x256xf32>
    %c1_16 = arith.constant 1 : index
    %c1_17 = arith.constant 1 : index
    %51 = memref.load %arg2[%c1_16, %c1_17] : memref<8x4xf32, #tpu.memory_space<smem>>
    %52 = vector.extract_strided_slice %3 {offsets = [1, 0], sizes = [1, 256], strides = [1, 1]} : vector<8x256xf32> to vector<1x256xf32>
    %53 = vector.broadcast %51 : f32 to vector<1x256xf32>
    %54 = arith.mulf %53, %52 : vector<1x256xf32>
    %55 = arith.addf %50, %54 : vector<1x256xf32>
    %c2_18 = arith.constant 2 : index
    %c1_19 = arith.constant 1 : index
    %56 = memref.load %arg2[%c2_18, %c1_19] : memref<8x4xf32, #tpu.memory_space<smem>>
    %57 = vector.extract_strided_slice %3 {offsets = [2, 0], sizes = [1, 256], strides = [1, 1]} : vector<8x256xf32> to vector<1x256xf32>
    %58 = vector.broadcast %56 : f32 to vector<1x256xf32>
    %59 = arith.mulf %58, %57 : vector<1x256xf32>
    %60 = arith.addf %55, %59 : vector<1x256xf32>
    %c3_20 = arith.constant 3 : index
    %c1_21 = arith.constant 1 : index
    %61 = memref.load %arg2[%c3_20, %c1_21] : memref<8x4xf32, #tpu.memory_space<smem>>
    %62 = vector.extract_strided_slice %3 {offsets = [3, 0], sizes = [1, 256], strides = [1, 1]} : vector<8x256xf32> to vector<1x256xf32>
    %63 = vector.broadcast %61 : f32 to vector<1x256xf32>
    %64 = arith.mulf %63, %62 : vector<1x256xf32>
    %65 = arith.addf %60, %64 : vector<1x256xf32>
    %c4_22 = arith.constant 4 : index
    %c1_23 = arith.constant 1 : index
    %66 = memref.load %arg2[%c4_22, %c1_23] : memref<8x4xf32, #tpu.memory_space<smem>>
    %67 = vector.extract_strided_slice %3 {offsets = [4, 0], sizes = [1, 256], strides = [1, 1]} : vector<8x256xf32> to vector<1x256xf32>
    %68 = vector.broadcast %66 : f32 to vector<1x256xf32>
    %69 = arith.mulf %68, %67 : vector<1x256xf32>
    %70 = arith.addf %65, %69 : vector<1x256xf32>
    %c5_24 = arith.constant 5 : index
    %c1_25 = arith.constant 1 : index
    %71 = memref.load %arg2[%c5_24, %c1_25] : memref<8x4xf32, #tpu.memory_space<smem>>
    %72 = vector.extract_strided_slice %3 {offsets = [5, 0], sizes = [1, 256], strides = [1, 1]} : vector<8x256xf32> to vector<1x256xf32>
    %73 = vector.broadcast %71 : f32 to vector<1x256xf32>
    %74 = arith.mulf %73, %72 : vector<1x256xf32>
    %75 = arith.addf %70, %74 : vector<1x256xf32>
    %c6_26 = arith.constant 6 : index
    %c1_27 = arith.constant 1 : index
    %76 = memref.load %arg2[%c6_26, %c1_27] : memref<8x4xf32, #tpu.memory_space<smem>>
    %77 = vector.extract_strided_slice %3 {offsets = [6, 0], sizes = [1, 256], strides = [1, 1]} : vector<8x256xf32> to vector<1x256xf32>
    %78 = vector.broadcast %76 : f32 to vector<1x256xf32>
    %79 = arith.mulf %78, %77 : vector<1x256xf32>
    %80 = arith.addf %75, %79 : vector<1x256xf32>
    %c7_28 = arith.constant 7 : index
    %c1_29 = arith.constant 1 : index
    %81 = memref.load %arg2[%c7_28, %c1_29] : memref<8x4xf32, #tpu.memory_space<smem>>
    %82 = vector.extract_strided_slice %3 {offsets = [7, 0], sizes = [1, 256], strides = [1, 1]} : vector<8x256xf32> to vector<1x256xf32>
    %83 = vector.broadcast %81 : f32 to vector<1x256xf32>
    %84 = arith.mulf %83, %82 : vector<1x256xf32>
    %85 = arith.addf %80, %84 : vector<1x256xf32>
    %86 = vector.extract_strided_slice %1 {offsets = [2, 0], sizes = [1, 256], strides = [1, 1]} : vector<4x256xf32> to vector<1x256xf32>
    %c0_30 = arith.constant 0 : index
    %c2_31 = arith.constant 2 : index
    %87 = memref.load %arg2[%c0_30, %c2_31] : memref<8x4xf32, #tpu.memory_space<smem>>
    %88 = vector.extract_strided_slice %3 {offsets = [0, 0], sizes = [1, 256], strides = [1, 1]} : vector<8x256xf32> to vector<1x256xf32>
    %89 = vector.broadcast %87 : f32 to vector<1x256xf32>
    %90 = arith.mulf %89, %88 : vector<1x256xf32>
    %91 = arith.addf %86, %90 : vector<1x256xf32>
    %c1_32 = arith.constant 1 : index
    %c2_33 = arith.constant 2 : index
    %92 = memref.load %arg2[%c1_32, %c2_33] : memref<8x4xf32, #tpu.memory_space<smem>>
    %93 = vector.extract_strided_slice %3 {offsets = [1, 0], sizes = [1, 256], strides = [1, 1]} : vector<8x256xf32> to vector<1x256xf32>
    %94 = vector.broadcast %92 : f32 to vector<1x256xf32>
    %95 = arith.mulf %94, %93 : vector<1x256xf32>
    %96 = arith.addf %91, %95 : vector<1x256xf32>
    %c2_34 = arith.constant 2 : index
    %c2_35 = arith.constant 2 : index
    %97 = memref.load %arg2[%c2_34, %c2_35] : memref<8x4xf32, #tpu.memory_space<smem>>
    %98 = vector.extract_strided_slice %3 {offsets = [2, 0], sizes = [1, 256], strides = [1, 1]} : vector<8x256xf32> to vector<1x256xf32>
    %99 = vector.broadcast %97 : f32 to vector<1x256xf32>
    %100 = arith.mulf %99, %98 : vector<1x256xf32>
    %101 = arith.addf %96, %100 : vector<1x256xf32>
    %c3_36 = arith.constant 3 : index
    %c2_37 = arith.constant 2 : index
    %102 = memref.load %arg2[%c3_36, %c2_37] : memref<8x4xf32, #tpu.memory_space<smem>>
    %103 = vector.extract_strided_slice %3 {offsets = [3, 0], sizes = [1, 256], strides = [1, 1]} : vector<8x256xf32> to vector<1x256xf32>
    %104 = vector.broadcast %102 : f32 to vector<1x256xf32>
    %105 = arith.mulf %104, %103 : vector<1x256xf32>
    %106 = arith.addf %101, %105 : vector<1x256xf32>
    %c4_38 = arith.constant 4 : index
    %c2_39 = arith.constant 2 : index
    %107 = memref.load %arg2[%c4_38, %c2_39] : memref<8x4xf32, #tpu.memory_space<smem>>
    %108 = vector.extract_strided_slice %3 {offsets = [4, 0], sizes = [1, 256], strides = [1, 1]} : vector<8x256xf32> to vector<1x256xf32>
    %109 = vector.broadcast %107 : f32 to vector<1x256xf32>
    %110 = arith.mulf %109, %108 : vector<1x256xf32>
    %111 = arith.addf %106, %110 : vector<1x256xf32>
    %c5_40 = arith.constant 5 : index
    %c2_41 = arith.constant 2 : index
    %112 = memref.load %arg2[%c5_40, %c2_41] : memref<8x4xf32, #tpu.memory_space<smem>>
    %113 = vector.extract_strided_slice %3 {offsets = [5, 0], sizes = [1, 256], strides = [1, 1]} : vector<8x256xf32> to vector<1x256xf32>
    %114 = vector.broadcast %112 : f32 to vector<1x256xf32>
    %115 = arith.mulf %114, %113 : vector<1x256xf32>
    %116 = arith.addf %111, %115 : vector<1x256xf32>
    %c6_42 = arith.constant 6 : index
    %c2_43 = arith.constant 2 : index
    %117 = memref.load %arg2[%c6_42, %c2_43] : memref<8x4xf32, #tpu.memory_space<smem>>
    %118 = vector.extract_strided_slice %3 {offsets = [6, 0], sizes = [1, 256], strides = [1, 1]} : vector<8x256xf32> to vector<1x256xf32>
    %119 = vector.broadcast %117 : f32 to vector<1x256xf32>
    %120 = arith.mulf %119, %118 : vector<1x256xf32>
    %121 = arith.addf %116, %120 : vector<1x256xf32>
    %c7_44 = arith.constant 7 : index
    %c2_45 = arith.constant 2 : index
    %122 = memref.load %arg2[%c7_44, %c2_45] : memref<8x4xf32, #tpu.memory_space<smem>>
    %123 = vector.extract_strided_slice %3 {offsets = [7, 0], sizes = [1, 256], strides = [1, 1]} : vector<8x256xf32> to vector<1x256xf32>
    %124 = vector.broadcast %122 : f32 to vector<1x256xf32>
    %125 = arith.mulf %124, %123 : vector<1x256xf32>
    %126 = arith.addf %121, %125 : vector<1x256xf32>
    %127 = vector.extract_strided_slice %1 {offsets = [3, 0], sizes = [1, 256], strides = [1, 1]} : vector<4x256xf32> to vector<1x256xf32>
    %c0_46 = arith.constant 0 : index
    %c3_47 = arith.constant 3 : index
    %128 = memref.load %arg2[%c0_46, %c3_47] : memref<8x4xf32, #tpu.memory_space<smem>>
    %129 = vector.extract_strided_slice %3 {offsets = [0, 0], sizes = [1, 256], strides = [1, 1]} : vector<8x256xf32> to vector<1x256xf32>
    %130 = vector.broadcast %128 : f32 to vector<1x256xf32>
    %131 = arith.mulf %130, %129 : vector<1x256xf32>
    %132 = arith.addf %127, %131 : vector<1x256xf32>
    %c1_48 = arith.constant 1 : index
    %c3_49 = arith.constant 3 : index
    %133 = memref.load %arg2[%c1_48, %c3_49] : memref<8x4xf32, #tpu.memory_space<smem>>
    %134 = vector.extract_strided_slice %3 {offsets = [1, 0], sizes = [1, 256], strides = [1, 1]} : vector<8x256xf32> to vector<1x256xf32>
    %135 = vector.broadcast %133 : f32 to vector<1x256xf32>
    %136 = arith.mulf %135, %134 : vector<1x256xf32>
    %137 = arith.addf %132, %136 : vector<1x256xf32>
    %c2_50 = arith.constant 2 : index
    %c3_51 = arith.constant 3 : index
    %138 = memref.load %arg2[%c2_50, %c3_51] : memref<8x4xf32, #tpu.memory_space<smem>>
    %139 = vector.extract_strided_slice %3 {offsets = [2, 0], sizes = [1, 256], strides = [1, 1]} : vector<8x256xf32> to vector<1x256xf32>
    %140 = vector.broadcast %138 : f32 to vector<1x256xf32>
    %141 = arith.mulf %140, %139 : vector<1x256xf32>
    %142 = arith.addf %137, %141 : vector<1x256xf32>
    %c3_52 = arith.constant 3 : index
    %c3_53 = arith.constant 3 : index
    %143 = memref.load %arg2[%c3_52, %c3_53] : memref<8x4xf32, #tpu.memory_space<smem>>
    %144 = vector.extract_strided_slice %3 {offsets = [3, 0], sizes = [1, 256], strides = [1, 1]} : vector<8x256xf32> to vector<1x256xf32>
    %145 = vector.broadcast %143 : f32 to vector<1x256xf32>
    %146 = arith.mulf %145, %144 : vector<1x256xf32>
    %147 = arith.addf %142, %146 : vector<1x256xf32>
    %c4_54 = arith.constant 4 : index
    %c3_55 = arith.constant 3 : index
    %148 = memref.load %arg2[%c4_54, %c3_55] : memref<8x4xf32, #tpu.memory_space<smem>>
    %149 = vector.extract_strided_slice %3 {offsets = [4, 0], sizes = [1, 256], strides = [1, 1]} : vector<8x256xf32> to vector<1x256xf32>
    %150 = vector.broadcast %148 : f32 to vector<1x256xf32>
    %151 = arith.mulf %150, %149 : vector<1x256xf32>
    %152 = arith.addf %147, %151 : vector<1x256xf32>
    %c5_56 = arith.constant 5 : index
    %c3_57 = arith.constant 3 : index
    %153 = memref.load %arg2[%c5_56, %c3_57] : memref<8x4xf32, #tpu.memory_space<smem>>
    %154 = vector.extract_strided_slice %3 {offsets = [5, 0], sizes = [1, 256], strides = [1, 1]} : vector<8x256xf32> to vector<1x256xf32>
    %155 = vector.broadcast %153 : f32 to vector<1x256xf32>
    %156 = arith.mulf %155, %154 : vector<1x256xf32>
    %157 = arith.addf %152, %156 : vector<1x256xf32>
    %c6_58 = arith.constant 6 : index
    %c3_59 = arith.constant 3 : index
    %158 = memref.load %arg2[%c6_58, %c3_59] : memref<8x4xf32, #tpu.memory_space<smem>>
    %159 = vector.extract_strided_slice %3 {offsets = [6, 0], sizes = [1, 256], strides = [1, 1]} : vector<8x256xf32> to vector<1x256xf32>
    %160 = vector.broadcast %158 : f32 to vector<1x256xf32>
    %161 = arith.mulf %160, %159 : vector<1x256xf32>
    %162 = arith.addf %157, %161 : vector<1x256xf32>
    %c7_60 = arith.constant 7 : index
    %c3_61 = arith.constant 3 : index
    %163 = memref.load %arg2[%c7_60, %c3_61] : memref<8x4xf32, #tpu.memory_space<smem>>
    %164 = vector.extract_strided_slice %3 {offsets = [7, 0], sizes = [1, 256], strides = [1, 1]} : vector<8x256xf32> to vector<1x256xf32>
    %165 = vector.broadcast %163 : f32 to vector<1x256xf32>
    %166 = arith.mulf %165, %164 : vector<1x256xf32>
    %167 = arith.addf %162, %166 : vector<1x256xf32>
    %168 = tpu.concatenate %44, %85, %126, %167 in 0 : vector<1x256xf32>, vector<1x256xf32>, vector<1x256xf32>, vector<1x256xf32> -> vector<4x256xf32>
    %c0_62 = arith.constant 0 : index
    %c0_63 = arith.constant 0 : index
    %c0_64 = arith.constant 0 : index
    %169 = vector.load %arg5[%c0_62, %c0_63, %c0_64] : memref<1x4x256xf32, #tpu.memory_space<vmem>>, vector<1x4x256xf32>
    %170 = vector.shape_cast %169 : vector<1x4x256xf32> to vector<4x256xf32>
    %171 = vector.shape_cast %168 : vector<4x256xf32> to vector<1x4x256xf32>
    tpu.vector_store %arg5[%c0_62, %c0_63, %c0_64], %171 {strides = array<i32>} : memref<1x4x256xf32, #tpu.memory_space<vmem>>, vector<1x4x256xf32>,
    return
  }
  func.func @transform_0(%arg0: i32, %arg1: i32, %arg2: memref<8x4xf32, #tpu.memory_space<smem>>) -> (i32, i32, i32) {
    %c0_i32 = arith.constant 0 : i32
    %c0_i32_0 = arith.constant 0 : i32
    return %arg0, %c0_i32, %arg1 : i32, i32, i32
  }
  func.func @transform_1(%arg0: i32, %arg1: i32, %arg2: memref<8x4xf32, #tpu.memory_space<smem>>) -> (i32, i32, i32) {
    %c0_i32 = arith.constant 0 : i32
    %c0_i32_0 = arith.constant 0 : i32
    return %arg0, %c0_i32, %arg1 : i32, i32, i32
  }
  func.func @transform_2(%arg0: i32, %arg1: i32, %arg2: memref<8x4xf32, #tpu.memory_space<smem>>) -> (i32, i32, i32) {
    %c0_i32 = arith.constant 0 : i32
    %c0_i32_0 = arith.constant 0 : i32
    return %arg0, %c0_i32, %arg1 : i32, i32, i32
  }
}

</mosaic_0001>

<llo_original>
// kernel: long_skip_unet_sum.1
$region0: #{long_skip_unet_sum.1}
  #allocation0 [shape = 'u32[]', space=smem, size = 0x4, offset = 0x4, fixed_abs, tag = 'smem constant byte address 0x4 - core index']
  #allocation1 [shape = 'u32[144,128]{1,0:T(1,128)}', space=vmem, size = 0x12000, scoped, tag = 'internal scratch']
  #allocation2 [shape = 's32[1]{0}', space=sflag, size = 0x4, scoped, tag = 'scoped memory for long_skip_unet_sum.1']
  #allocation3 [shape = 'u8[4096]{0}', space=smem, size = 0x1000, scoped, tag = 'prefetched SMEM operand 0']
  %s0 = inlined_call_operand.vmem [shape: f32[8,4], index: 0, kind: input, shape index: {}]
  %s1 = inlined_call_operand.vmem [shape: f32[2,4,256], index: 1, kind: input, shape index: {}]
  %s2 = inlined_call_operand.vmem [shape: f32[2,8,256], index: 2, kind: input, shape index: {}]
  %s3 = inlined_call_operand.vmem [shape: f32[2,4,256], index: 3, kind: output, shape index: {}]
  %s4 = sld [smem:[#allocation0]]
  $region41: #{long_skip_unet_sum.1} parent=0
    _
  %s6 = ssub.s32 1, %s4
  %s7 = scalar_select 0, %s6, %s4
  %s8 = sshll.u32 %s0, 4
  %s9 = int_to_ptr.vmem [resolvable:$true] %s8
  %11 = dma.vmem_to_smem %s9, 128, [#allocation3], [#allocation2]
  %12 = dma.done [#allocation2], 128
  %13 = sfence
  loop: start=0, step=1, limit=4
  $region2: #{long_skip_unet_sum.1} parent=0 // loop_pre_header
    _
  $region3: #{long_skip_unet_sum.1} parent=0 // loop_header
    %s15 = sphi 0, %s19
    %p16 = scmp.ge.s32.totalorder %s15, 4
    %s22 = sphi 0, %s34
    %s23 = sphi 0, %s30
    %s24 = sphi 0, %s22
    %s25 = sphi 0, %s23
    %s26 = sphi 0, %s24
    %s27 = sphi 0, %s25
    %s39 = sphi 0, %s41
    %s42 = sphi 0, %s39
    %s43 = sphi 0, %s42
    %s59 = sphi 0, %s43
    %s67 = sphi 0, %s69
    %s70 = sphi 0, %s67
    %s71 = sphi 0, %s70
    %s87 = sphi 0, %s71
    %s95 = sphi 0, %s97
    %s98 = sphi 0, %s95
    %s99 = sphi 0, %s98
    %s115 = sphi 0, %s99
  $region4: #{long_skip_unet_sum.1} parent=0 // loop_header_branch
    %18 = sbr.rel (%p16) target = $region8
  $region5: #{long_skip_unet_sum.1} parent=0 // loop_body
    %s20 = ssub.s32 %s15, 1
    %s21 = ssub.s32 %s15, 2
    %s28 = sadd.s32 1, %s23
    %p29 = scmp.ge.s32.totalorder %s28, 1
    %s30 = scalar_select %p29, 0, %s28
    %s31 = sadd.s32 1, %s22
    %s32 = scalar_select %p29, %s31, %s22
    %p33 = scmp.ge.s32.totalorder %s32, 2
    %s34 = scalar_select %p33, 0, %s32
    %s35 = ssub.s32 %s22, %s34
    %s36 = ssub.s32 %s23, %s30
    %s37 = sor.u32 %s35, %s36
    %p38 = scmp.eq.s32.totalorder %s37, 0
    %s40 = sadd.s32 %s39, 1
    %s41 = scalar_select %p38, %s39, %s40
    %p44 = pneg %p38
    %p45 = scmp.eq.s32.totalorder %s15, 1
    %p46 = por %p44, %p45
    %p47 = scmp.ne.s32.totalorder %s39, %s42
    %p48 = scmp.eq.s32.totalorder %s15, 0
    %p49 = por %p47, %p48
    %p50 = scmp.ne.s32.totalorder %s39, %s42
    %p51 = scmp.eq.s32.totalorder %s20, 1
    %p52 = por %p50, %p51
    %p53 = scmp.ne.s32.totalorder %s42, %s43
    %p54 = scmp.eq.s32.totalorder %s20, 0
    %p55 = por %p53, %p54
    %p56 = scmp.ne.s32.totalorder %s42, %s43
    %p57 = scmp.eq.s32.totalorder %s21, 1
    %p58 = por %p56, %p57
    %p60 = scmp.ne.s32.totalorder %s43, %s59
    %p61 = scmp.eq.s32.totalorder %s21, 0
    %p62 = por %p60, %p61
    %s63 = ssub.s32 %s22, %s34
    %s64 = ssub.s32 %s23, %s30
    %s65 = sor.u32 %s63, %s64
    %p66 = scmp.eq.s32.totalorder %s65, 0
    %s68 = sadd.s32 %s67, 1
    %s69 = scalar_select %p66, %s67, %s68
    %p72 = pneg %p66
    %p73 = scmp.eq.s32.totalorder %s15, 1
    %p74 = por %p72, %p73
    %p75 = scmp.ne.s32.totalorder %s67, %s70
    %p76 = scmp.eq.s32.totalorder %s15, 0
    %p77 = por %p75, %p76
    %p78 = scmp.ne.s32.totalorder %s67, %s70
    %p79 = scmp.eq.s32.totalorder %s20, 1
    %p80 = por %p78, %p79
    %p81 = scmp.ne.s32.totalorder %s70, %s71
    %p82 = scmp.eq.s32.totalorder %s20, 0
    %p83 = por %p81, %p82
    %p84 = scmp.ne.s32.totalorder %s70, %s71
    %p85 = scmp.eq.s32.totalorder %s21, 1
    %p86 = por %p84, %p85
    %p88 = scmp.ne.s32.totalorder %s71, %s87
    %p89 = scmp.eq.s32.totalorder %s21, 0
    %p90 = por %p88, %p89
    %s91 = ssub.s32 %s22, %s34
    %s92 = ssub.s32 %s23, %s30
    %s93 = sor.u32 %s91, %s92
    %p94 = scmp.eq.s32.totalorder %s93, 0
    %s96 = sadd.s32 %s95, 1
    %s97 = scalar_select %p94, %s95, %s96
    %p100 = pneg %p94
    %p101 = scmp.eq.s32.totalorder %s15, 1
    %p102 = por %p100, %p101
    %p103 = scmp.ne.s32.totalorder %s95, %s98
    %p104 = scmp.eq.s32.totalorder %s15, 0
    %p105 = por %p103, %p104
    %p106 = scmp.ne.s32.totalorder %s95, %s98
    %p107 = scmp.eq.s32.totalorder %s20, 1
    %p108 = por %p106, %p107
    %p109 = scmp.ne.s32.totalorder %s98, %s99
    %p110 = scmp.eq.s32.totalorder %s20, 0
    %p111 = por %p109, %p110
    %p112 = scmp.ne.s32.totalorder %s98, %s99
    %p113 = scmp.eq.s32.totalorder %s21, 1
    %p114 = por %p112, %p113
    %p116 = scmp.ne.s32.totalorder %s99, %s115
    %p117 = scmp.eq.s32.totalorder %s21, 0
    %p118 = por %p116, %p117
    %p119 = scmp.le.s32.totalorder 1, %s15
    %p120 = scmp.lt.s32.totalorder %s15, 3
    %p121 = pnand %p119, %p120
    %p122 = pneg %p121
    // Predicated region
    $region9: #{long_skip_unet_sum.1} parent=5 // pred_check
      _
    $region10: #{long_skip_unet_sum.1} parent=5 // pred_check_branch
      %124 = sbr.rel (%p121) target = $region12
    $region11: #{long_skip_unet_sum.1} parent=5 // pred_region
      %s125 = ssub.s32 %s15, 1
    $region12: #{long_skip_unet_sum.1} parent=5 // pred_fallthru
      _
    %p126 = scmp.lt.s32.totalorder %s15, 2
    // Predicated region
    $region13: #{long_skip_unet_sum.1} parent=5 // pred_check
      %p127 = pneg %p126
    $region14: #{long_skip_unet_sum.1} parent=5 // pred_check_branch
      %129 = sbr.rel (%p127) target = $region16
    $region15: #{long_skip_unet_sum.1} parent=5 // pred_region
      // Predicated region
      $region17: #{long_skip_unet_sum.1} parent=15 // pred_check
        %p130 = pneg %p49
      $region18: #{long_skip_unet_sum.1} parent=15 // pred_check_branch
        %132 = sbr.rel (%p130) target = $region20
      $region19: #{long_skip_unet_sum.1} parent=15 // pred_region
        %s133 = smul.u32 2, %s23
        %p134 = scmp.lt.s32.totalorder %s22, 1
        %s135 = scalar_select %p134, %s22, 1
        %p136 = scmp.lt.s32.totalorder %s133, 1
        %s137 = scalar_select %p136, %s133, 1
        %s138 = smul.addr %s135, 2
        %s139 = sadd.s32 %s137, %s138
        %s140 = smul.addr %s139, 4
        %s141 = scalar_lea.vmem %s1, %s140
        %s142 = smul.u32 2, %s23
      $region20: #{long_skip_unet_sum.1} parent=15 // pred_fallthru
        _
      // Predicated region
      $region21: #{long_skip_unet_sum.1} parent=15 // pred_check
        %p143 = pneg %p77
      $region22: #{long_skip_unet_sum.1} parent=15 // pred_check_branch
        %145 = sbr.rel (%p143) target = $region24
      $region23: #{long_skip_unet_sum.1} parent=15 // pred_region
        %s146 = smul.u32 2, %s23
        %p147 = scmp.lt.s32.totalorder %s22, 1
        %s148 = scalar_select %p147, %s22, 1
        %p149 = scmp.lt.s32.totalorder %s146, 1
        %s150 = scalar_select %p149, %s146, 1
        %s151 = smul.addr %s148, 2
        %s152 = sadd.s32 %s150, %s151
        %s153 = smul.addr %s152, 8
        %s154 = scalar_lea.vmem %s2, %s153
        %s155 = smul.u32 2, %s23
      $region24: #{long_skip_unet_sum.1} parent=15 // pred_fallthru
        _
    $region16: #{long_skip_unet_sum.1} parent=5 // pred_fallthru
      _
    %p156 = scmp.le.s32.totalorder 1, %s15
    %p157 = scmp.lt.s32.totalorder %s15, 3
    %p158 = pnand %p156, %p157
    %p159 = pneg %p158
    // Predicated region
    $region25: #{long_skip_unet_sum.1} parent=5 // pred_check
      _
    $region26: #{long_skip_unet_sum.1} parent=5 // pred_check_branch
      %161 = sbr.rel (%p158) target = $region28
    $region27: #{long_skip_unet_sum.1} parent=5 // pred_region
      %s162 = ssub.s32 %s15, 1
      %s163 = smul.u32 2, %s25
      %p164 = scmp.lt.s32.totalorder %s24, 1
      %s165 = scalar_select %p164, %s24, 1
      %p166 = scmp.lt.s32.totalorder %s163, 1
      %s167 = scalar_select %p166, %s163, 1
      %s168 = smul.addr %s165, 2
      %s169 = sadd.s32 %s167, %s168
      %s170 = smul.addr %s169, 4
      %s171 = scalar_lea.vmem %s1, %s170
      %p172 = pneg %p55
      %p173 = pneg %p52
      %s174 = smul.u32 2, %s25
      %p175 = scmp.lt.s32.totalorder %s24, 1
      %s176 = scalar_select %p175, %s24, 1
      %p177 = scmp.lt.s32.totalorder %s174, 1
      %s178 = scalar_select %p177, %s174, 1
      %s179 = smul.addr %s176, 2
      %s180 = sadd.s32 %s178, %s179
      %s181 = smul.addr %s180, 8
      %s182 = scalar_lea.vmem %s2, %s181
      %p183 = pneg %p83
      %p184 = pneg %p80
      %p185 = pneg %p111
      %p186 = pneg %p108
      %s187 = smul.u32 2, %s25
      %p188 = scmp.lt.s32.totalorder %s24, 1
      %s189 = scalar_select %p188, %s24, 1
      %p190 = scmp.lt.s32.totalorder %s187, 1
      %s191 = scalar_select %p190, %s187, 1
      %s192 = smul.addr %s189, 2
      %s193 = sadd.s32 %s191, %s192
      %s194 = smul.addr %s193, 4
      %s195 = scalar_lea.vmem %s3, %s194
      %s196 = smul.u32 2, %s25
      %p197 = scmp.lt.s32.totalorder %s24, 1
      %s198 = scalar_select %p197, %s24, 1
      %p199 = scmp.lt.s32.totalorder %s196, 1
      %s200 = scalar_select %p199, %s196, 1
      %s201 = smul.addr %s198, 2
      %s202 = sadd.s32 %s200, %s201
      %s203 = smul.addr %s202, 4
      %s204 = scalar_lea.vmem %s1, %s203
      %s205 = smul.u32 2, %s25
      %s206 = smul.u32 2, %s25
      %p207 = scmp.lt.s32.totalorder %s24, 1
      %s208 = scalar_select %p207, %s24, 1
      %p209 = scmp.lt.s32.totalorder %s206, 1
      %s210 = scalar_select %p209, %s206, 1
      %s211 = smul.addr %s208, 2
      %s212 = sadd.s32 %s210, %s211
      %s213 = smul.addr %s212, 8
      %s214 = scalar_lea.vmem %s2, %s213
      %s215 = smul.u32 2, %s25
      %s216 = smul.u32 2, %s25
      %p217 = scmp.lt.s32.totalorder %s24, 1
      %s218 = scalar_select %p217, %s24, 1
      %p219 = scmp.lt.s32.totalorder %s216, 1
      %s220 = scalar_select %p219, %s216, 1
      %s221 = smul.addr %s218, 2
      %s222 = sadd.s32 %s220, %s221
      %s223 = smul.addr %s222, 4
      %s224 = scalar_lea.vmem %s3, %s223
      %s225 = smul.u32 2, %s25
      %v226 = vld [vmem:[%s204] sm:$0xff]
      %v227 = vld [vmem:[%s214] sm:$0xff]
      %v228 = vld [vmem:[%s214 + $0x8] sm:$0xff]
      %s229 = sld [smem:[#allocation3]]
      %v230 = vstv %s229
      %v231 = vmul.f32 %v230, %v227
      %v232 = vmul.f32 %v230, %v228
      %v235 = vcombine.low %v231, %v232
      %v237 = vadd.f32 %v226, %v235
      %s238 = sld [smem:[#allocation3 + $0x80]]
      %v239 = vstv %s238
      %v240 = vmul.f32 %v239, %v227
      %v241 = vmul.f32 %v239, %v228
      %v244 = vcombine.low %v240, %v241
      %v245 = vrot.slane %v244, 5
      %v246 = vrot.slane %v245, 4
      %v248 = vadd.f32 %v237, %v246
      %s249 = sld [smem:[#allocation3 + $0x100]]
      %v250 = vstv %s249
      %v251 = vmul.f32 %v250, %v227
      %v252 = vmul.f32 %v250, %v228
      %v255 = vcombine.low %v251, %v252
      %v256 = vrot.slane %v255, 6
      %v257 = vrot.slane %v256, 4
      %v259 = vadd.f32 %v248, %v257
      %s260 = sld [smem:[#allocation3 + $0x180]]
      %v261 = vstv %s260
      %v262 = vmul.f32 %v261, %v227
      %v263 = vmul.f32 %v261, %v228
      %v266 = vcombine.low %v262, %v263
      %v267 = vrot.slane %v266, 7
      %v268 = vrot.slane %v267, 4
      %v270 = vadd.f32 %v259, %v268
      %s271 = sld [smem:[#allocation3 + $0x200]]
      %v272 = vstv %s271
      %v273 = vmul.f32 %v272, %v227
      %v274 = vmul.f32 %v272, %v228
      %v277 = vcombine.high %v273, %v274
      %v279 = vadd.f32 %v270, %v277
      %s280 = sld [smem:[#allocation3 + $0x280]]
      %v281 = vstv %s280
      %v282 = vmul.f32 %v281, %v227
      %v283 = vmul.f32 %v281, %v228
      %v286 = vcombine.high %v282, %v283
      %v287 = vrot.slane %v286, 5
      %v288 = vrot.slane %v287, 4
      %v290 = vadd.f32 %v279, %v288
      %s291 = sld [smem:[#allocation3 + $0x300]]
      %v292 = vstv %s291
      %v293 = vmul.f32 %v292, %v227
      %v294 = vmul.f32 %v292, %v228
      %v297 = vcombine.high %v293, %v294
      %v298 = vrot.slane %v297, 6
      %v299 = vrot.slane %v298, 4
      %v301 = vadd.f32 %v290, %v299
      %s302 = sld [smem:[#allocation3 + $0x380]]
      %v303 = vstv %s302
      %v304 = vmul.f32 %v303, %v227
      %v305 = vmul.f32 %v303, %v228
      %v308 = vcombine.high %v304, %v305
      %v309 = vrot.slane %v308, 7
      %v310 = vrot.slane %v309, 4
      %v312 = vadd.f32 %v301, %v310
      %s313 = sld [smem:[#allocation3 + $0x1]]
      %v314 = vstv %s313
      %v315 = vmul.f32 %v314, %v227
      %v316 = vmul.f32 %v314, %v228
      %v319 = vcombine.low %v315, %v316
      %v320 = vrot.slane %v319, 7
      %v322 = vadd.f32 %v226, %v320
      %s323 = sld [smem:[#allocation3 + $0x81]]
      %v324 = vstv %s323
      %v325 = vmul.f32 %v324, %v227
      %v326 = vmul.f32 %v324, %v228
      %v329 = vcombine.low %v325, %v326
      %v331 = vadd.f32 %v322, %v329
      %s332 = sld [smem:[#allocation3 + $0x101]]
      %v333 = vstv %s332
      %v334 = vmul.f32 %v333, %v227
      %v335 = vmul.f32 %v333, %v228
      %v338 = vcombine.low %v334, %v335
      %v339 = vrot.slane %v338, 5
      %v340 = vrot.slane %v339, 4
      %v342 = vadd.f32 %v331, %v340
      %s343 = sld [smem:[#allocation3 + $0x181]]
      %v344 = vstv %s343
      %v345 = vmul.f32 %v344, %v227
      %v346 = vmul.f32 %v344, %v228
      %v349 = vcombine.low %v345, %v346
      %v350 = vrot.slane %v349, 6
      %v351 = vrot.slane %v350, 4
      %v353 = vadd.f32 %v342, %v351
      %s354 = sld [smem:[#allocation3 + $0x201]]
      %v355 = vstv %s354
      %v356 = vmul.f32 %v355, %v227
      %v357 = vmul.f32 %v355, %v228
      %v360 = vcombine.high %v356, %v357
      %v361 = vrot.slane %v360, 7
      %v363 = vadd.f32 %v353, %v361
      %s364 = sld [smem:[#allocation3 + $0x281]]
      %v365 = vstv %s364
      %v366 = vmul.f32 %v365, %v227
      %v367 = vmul.f32 %v365, %v228
      %v370 = vcombine.high %v366, %v367
      %v372 = vadd.f32 %v363, %v370
      %s373 = sld [smem:[#allocation3 + $0x301]]
      %v374 = vstv %s373
      %v375 = vmul.f32 %v374, %v227
      %v376 = vmul.f32 %v374, %v228
      %v379 = vcombine.high %v375, %v376
      %v380 = vrot.slane %v379, 5
      %v381 = vrot.slane %v380, 4
      %v383 = vadd.f32 %v372, %v381
      %s384 = sld [smem:[#allocation3 + $0x381]]
      %v385 = vstv %s384
      %v386 = vmul.f32 %v385, %v227
      %v387 = vmul.f32 %v385, %v228
      %v390 = vcombine.high %v386, %v387
      %v391 = vrot.slane %v390, 6
      %v392 = vrot.slane %v391, 4
      %v394 = vadd.f32 %v383, %v392
      %s395 = sld [smem:[#allocation3 + $0x2]]
      %v396 = vstv %s395
      %v397 = vmul.f32 %v396, %v227
      %v398 = vmul.f32 %v396, %v228
      %v401 = vcombine.low %v397, %v398
      %v402 = vrot.slane %v401, 6
      %v404 = vadd.f32 %v226, %v402
      %s405 = sld [smem:[#allocation3 + $0x82]]
      %v406 = vstv %s405
      %v407 = vmul.f32 %v406, %v227
      %v408 = vmul.f32 %v406, %v228
      %v411 = vcombine.low %v407, %v408
      %v412 = vrot.slane %v411, 7
      %v414 = vadd.f32 %v404, %v412
      %s415 = sld [smem:[#allocation3 + $0x102]]
      %v416 = vstv %s415
      %v417 = vmul.f32 %v416, %v227
      %v418 = vmul.f32 %v416, %v228
      %v421 = vcombine.low %v417, %v418
      %v423 = vadd.f32 %v414, %v421
      %s424 = sld [smem:[#allocation3 + $0x182]]
      %v425 = vstv %s424
      %v426 = vmul.f32 %v425, %v227
      %v427 = vmul.f32 %v425, %v228
      %v430 = vcombine.low %v426, %v427
      %v431 = vrot.slane %v430, 5
      %v432 = vrot.slane %v431, 4
      %v434 = vadd.f32 %v423, %v432
      %s435 = sld [smem:[#allocation3 + $0x202]]
      %v436 = vstv %s435
      %v437 = vmul.f32 %v436, %v227
      %v438 = vmul.f32 %v436, %v228
      %v441 = vcombine.high %v437, %v438
      %v442 = vrot.slane %v441, 6
      %v444 = vadd.f32 %v434, %v442
      %s445 = sld [smem:[#allocation3 + $0x282]]
      %v446 = vstv %s445
      %v447 = vmul.f32 %v446, %v227
      %v448 = vmul.f32 %v446, %v228
      %v451 = vcombine.high %v447, %v448
      %v452 = vrot.slane %v451, 7
      %v454 = vadd.f32 %v444, %v452
      %s455 = sld [smem:[#allocation3 + $0x302]]
      %v456 = vstv %s455
      %v457 = vmul.f32 %v456, %v227
      %v458 = vmul.f32 %v456, %v228
      %v461 = vcombine.high %v457, %v458
      %v463 = vadd.f32 %v454, %v461
      %s464 = sld [smem:[#allocation3 + $0x382]]
      %v465 = vstv %s464
      %v466 = vmul.f32 %v465, %v227
      %v467 = vmul.f32 %v465, %v228
      %v470 = vcombine.high %v466, %v467
      %v471 = vrot.slane %v470, 5
      %v472 = vrot.slane %v471, 4
      %v474 = vadd.f32 %v463, %v472
      %s475 = sld [smem:[#allocation3 + $0x3]]
      %v476 = vstv %s475
      %v477 = vmul.f32 %v476, %v227
      %v478 = vmul.f32 %v476, %v228
      %v481 = vcombine.low %v477, %v478
      %v482 = vrot.slane %v481, 5
      %v484 = vadd.f32 %v226, %v482
      %s485 = sld [smem:[#allocation3 + $0x83]]
      %v486 = vstv %s485
      %v487 = vmul.f32 %v486, %v227
      %v488 = vmul.f32 %v486, %v228
      %v491 = vcombine.low %v487, %v488
      %v492 = vrot.slane %v491, 6
      %v494 = vadd.f32 %v484, %v492
      %s495 = sld [smem:[#allocation3 + $0x103]]
      %v496 = vstv %s495
      %v497 = vmul.f32 %v496, %v227
      %v498 = vmul.f32 %v496, %v228
      %v501 = vcombine.low %v497, %v498
      %v502 = vrot.slane %v501, 7
      %v504 = vadd.f32 %v494, %v502
      %s505 = sld [smem:[#allocation3 + $0x183]]
      %v506 = vstv %s505
      %v507 = vmul.f32 %v506, %v227
      %v508 = vmul.f32 %v506, %v228
      %v511 = vcombine.low %v507, %v508
      %v513 = vadd.f32 %v504, %v511
      %s514 = sld [smem:[#allocation3 + $0x203]]
      %v515 = vstv %s514
      %v516 = vmul.f32 %v515, %v227
      %v517 = vmul.f32 %v515, %v228
      %v520 = vcombine.high %v516, %v517
      %v521 = vrot.slane %v520, 5
      %v523 = vadd.f32 %v513, %v521
      %s524 = sld [smem:[#allocation3 + $0x283]]
      %v525 = vstv %s524
      %v526 = vmul.f32 %v525, %v227
      %v527 = vmul.f32 %v525, %v228
      %v530 = vcombine.high %v526, %v527
      %v531 = vrot.slane %v530, 6
      %v533 = vadd.f32 %v523, %v531
      %s534 = sld [smem:[#allocation3 + $0x303]]
      %v535 = vstv %s534
      %v536 = vmul.f32 %v535, %v227
      %v537 = vmul.f32 %v535, %v228
      %v540 = vcombine.high %v536, %v537
      %v541 = vrot.slane %v540, 7
      %v543 = vadd.f32 %v533, %v541
      %s544 = sld [smem:[#allocation3 + $0x383]]
      %v545 = vstv %s544
      %v546 = vmul.f32 %v545, %v227
      %v547 = vmul.f32 %v545, %v228
      %v550 = vcombine.high %v546, %v547
      %v552 = vadd.f32 %v543, %v550
      %v554 = vlaneseq
      %v555 = vshrl.u32 %v554, 7
      %v556 = vsub.s32 0, %v555
      %v557 = vrot.slane %v312, %v556
      %v558 = vlaneseq
      %v559 = vshrl.u32 %v558, 7
      %v560 = vsub.s32 4, %v559
      %v561 = vrot.slane %v312, %v560
      %v565 = vlaneseq
      %v566 = vshrl.u32 %v565, 7
      %v567 = vsub.s32 1, %v566
      %v568 = vrot.slane %v394, %v567
      %v569 = vlaneseq
      %v570 = vshrl.u32 %v569, 7
      %v571 = vsub.s32 5, %v570
      %v572 = vrot.slane %v394, %v571
      %v576 = vlaneseq
      %v577 = vshrl.u32 %v576, 7
      %v578 = vsub.s32 2, %v577
      %v579 = vrot.slane %v474, %v578
      %v580 = vlaneseq
      %v581 = vshrl.u32 %v580, 7
      %v582 = vsub.s32 6, %v581
      %v583 = vrot.slane %v474, %v582
      %v587 = vlaneseq
      %v588 = vshrl.u32 %v587, 7
      %v589 = vsub.s32 3, %v588
      %v590 = vrot.slane %v552, %v589
      %v591 = vlaneseq
      %v592 = vshrl.u32 %v591, 7
      %v593 = vsub.s32 7, %v592
      %v594 = vrot.slane %v552, %v593
      %vm597 = vcmask 1040384
      %v598 = vsel %vm597, %v557, %v568
      %v599 = vsel %vm597, %v561, %v572
      %vm600 = vcmask 1041408
      %v601 = vsel %vm600, %v598, %v579
      %v602 = vsel %vm600, %v599, %v583
      %vm603 = vcmask 1042432
      %v604 = vsel %vm603, %v601, %v590
      %v605 = vsel %vm603, %v602, %v594
      %v608 = vcombine.low %v604, %v605
      %610 = vst [vmem:[%s224] sm:$0xff] %v608
      %s611 = smul.u32 2, %s25
      %p612 = scmp.lt.s32.totalorder %s24, 1
      %s613 = scalar_select %p612, %s24, 1
      %p614 = scmp.lt.s32.totalorder %s611, 1
      %s615 = scalar_select %p614, %s611, 1
      %s616 = smul.addr %s613, 2
      %s617 = sadd.s32 %s615, %s616
      %s618 = smul.addr %s617, 4
      %s619 = scalar_lea.vmem %s3, %s618
      // Predicated region
      $region29: #{long_skip_unet_sum.1} parent=27 // pred_check
        %p620 = pneg %p108
      $region30: #{long_skip_unet_sum.1} parent=27 // pred_check_branch
        %622 = sbr.rel (%p620) target = $region32
      $region31: #{long_skip_unet_sum.1} parent=27 // pred_region
        %s623 = smul.u32 2, %s25
      $region32: #{long_skip_unet_sum.1} parent=27 // pred_fallthru
        _
    $region28: #{long_skip_unet_sum.1} parent=5 // pred_fallthru
      _
    %p624 = scmp.le.s32.totalorder 2, %s15
    // Predicated region
    $region33: #{long_skip_unet_sum.1} parent=5 // pred_check
      %p625 = pneg %p624
    $region34: #{long_skip_unet_sum.1} parent=5 // pred_check_branch
      %627 = sbr.rel (%p625) target = $region36
    $region35: #{long_skip_unet_sum.1} parent=5 // pred_region
      %s628 = ssub.s32 %s15, 2
      // Predicated region
      $region37: #{long_skip_unet_sum.1} parent=35 // pred_check
        %p629 = pneg %p114
      $region38: #{long_skip_unet_sum.1} parent=35 // pred_check_branch
        %631 = sbr.rel (%p629) target = $region40
      $region39: #{long_skip_unet_sum.1} parent=35 // pred_region
        %s632 = smul.u32 2, %s27
        %p633 = scmp.lt.s32.totalorder %s26, 1
        %s634 = scalar_select %p633, %s26, 1
        %p635 = scmp.lt.s32.totalorder %s632, 1
        %s636 = scalar_select %p635, %s632, 1
        %s637 = smul.addr %s634, 2
        %s638 = sadd.s32 %s636, %s637
        %s639 = smul.addr %s638, 4
        %s640 = scalar_lea.vmem %s3, %s639
      $region40: #{long_skip_unet_sum.1} parent=35 // pred_fallthru
        _
    $region36: #{long_skip_unet_sum.1} parent=5 // pred_fallthru
      _
  $region6: #{long_skip_unet_sum.1} parent=0 // loop_footer
    %s19 = sadd.s32 1, %s15
  $region7: #{long_skip_unet_sum.1} parent=0 // loop_footer_branch
    %14 = sbr.rel target = $region3
  $region8: #{long_skip_unet_sum.1} parent=0 // loop_exit
    _

</llo_original>
